<compile_context>
chip_gen: v7x
topology: tpu7x:2x2x1
jax: 0.10.0
libtpu: 0.0.40
codegen_flags: <defaults>
</compile_context>

<pallas_src>
import functools

import jax
import jax.numpy as jnp
from jax.experimental import pallas as pl
from jax.experimental.pallas import tpu as pltpu


def _attention_core(scale, q_ref, k_ref, v_ref, o_ref, p_post, *,
                    fold_scale, approx_recip):
    # q_ref: (bt, Lq, D) bf16 ; k_ref: (bt, Lk, D) bf16 (original layout — the
    # contraction over the shared last dim is handled by the MXU, no transpose
    # copy in the wrapper) ; v_ref: (bt, Lk, Dv) bf16 ; o_ref: (bt, Lq, Dv) f32.
    q = q_ref[...]
    if fold_scale:
        # Fold the scalar into Q: an (Lq x D) multiply instead of (Lq x Lk).
        q = (q.astype(jnp.float32) * scale).astype(jnp.bfloat16)

    s = jnp.einsum("bqd,bkd->bqk", q, k_ref[...],
                   preferred_element_type=jnp.float32)
    if not fold_scale:
        s = s * scale

    # Numerically-stable softmax over the last axis (f32 throughout).
    m = jnp.max(s, axis=-1, keepdims=True)
    e = jnp.exp(s - m)
    denom = jnp.sum(e, axis=-1, keepdims=True)
    if approx_recip:
        p = e * pl.reciprocal(denom, approx=True)  # EUP vrcp — free bundle slot
    else:
        p = e / denom                              # interpret/CPU-safe fallback

    p = p_post(p)  # dropout (or identity)

    o = jnp.einsum("bqk,bkv->bqv", p.astype(jnp.bfloat16), v_ref[...],
                   preferred_element_type=jnp.float32)
    o_ref[...] = o.astype(o_ref.dtype)


def _kernel_nodrop(scale_ref, q_ref, k_ref, v_ref, o_ref, *,
                   fold_scale, approx_recip):
    _attention_core(scale_ref[0, 0], q_ref, k_ref, v_ref, o_ref, lambda p: p,
                    fold_scale=fold_scale, approx_recip=approx_recip)


def _kernel_drop_prng(seed_ref, scale_ref, q_ref, k_ref, v_ref, o_ref, *,
                      keep_prob, fold_scale, approx_recip):
    # Per-grid-step seed keeps the mask deterministic even when the "parallel"
    # batch axis is sharded across TensorCores.
    pltpu.prng_seed(seed_ref[0] + pl.program_id(0))

    def p_post(p):
        bits = pltpu.prng_random_bits(p.shape)
        # Low 24 bits -> uniform [0, 1); avoids int32/uint32 signedness issues.
        u = (bits & 0xFFFFFF).astype(jnp.float32) * (1.0 / (1 << 24))
        keep = u < keep_prob
        return jnp.where(keep, p * (1.0 / keep_prob), 0.0)

    _attention_core(scale_ref[0, 0], q_ref, k_ref, v_ref, o_ref, p_post,
                    fold_scale=fold_scale, approx_recip=approx_recip)


def _kernel_drop_mask(scale_ref, q_ref, k_ref, v_ref, mask_ref, o_ref, *,
                      keep_prob, fold_scale, approx_recip):
    # Non-TPU / interpret fallback: compact bf16 keep mask, scaled in-kernel.
    def p_post(p):
        return p * (mask_ref[...].astype(jnp.float32) * (1.0 / keep_prob))

    _attention_core(scale_ref[0, 0], q_ref, k_ref, v_ref, o_ref, p_post,
                    fold_scale=fold_scale, approx_recip=approx_recip)


def sdpa_pallas(query, key, value, scale_factor, *, dropout_p=0.5, seed=0, rng=None):
    B, Lq, D = query.shape
    Bk, Lk, Dk = key.shape
    Bv, Lkv, Dv = value.shape
    assert Bk == B and Bv == B and Dk == D and Lkv == Lk
    assert 0.0 <= dropout_p < 1.0

    on_tpu = jax.default_backend() == "tpu"

    # HBM bytes dominate here -> ship Q/K/V as bf16 (they feed bf16 MXU operands
    # anyway); accumulation, softmax and the output stay f32.
    q_bf = query.astype(jnp.bfloat16)
    k_bf = key.astype(jnp.bfloat16)
    v_bf = value.astype(jnp.bfloat16)
    scale = jnp.asarray(scale_factor, dtype=jnp.float32).reshape(1, 1)

    # Generation-aware batch tiling: keep double-buffered DMA tiles plus f32
    # softmax intermediates well inside scoped VMEM, and cap bt at 8 so the
    # (Lq, Lk) f32 intermediates don't push the kernel into the spill regime.
    try:
        vmem_cap = int(pltpu.get_tpu_info().vmem_capacity_bytes)
    except Exception:  # pragma: no cover - conservative default (v7x-sized)
        vmem_cap = 64 << 20
    tile_budget = min(vmem_cap // 4, 24 << 20)
    dma_per_batch = 2 * (Lq * D + Lk * D + Lk * Dv) + 4 * Lq * Dv  # bf16 in, f32 out
    interm_per_batch = 4 * (Lq * Lk * 4)                           # f32 scores/probs
    bt = 1
    for cand in (8, 4, 2, 1):
        if B % cand == 0 and cand * (2 * dma_per_batch + interm_per_batch) <= tile_budget:
            bt = cand
            break

    fold_scale = Lk > D       # fold the scalar into Q only when it saves VALU work
    approx_recip = on_tpu

    smem_spec = pl.BlockSpec(memory_space=pltpu.MemorySpace.SMEM)
    common_specs = [
        pl.BlockSpec((bt, Lq, D), lambda b: (b, 0, 0)),    # query  (bf16)
        pl.BlockSpec((bt, Lk, D), lambda b: (b, 0, 0)),    # key    (bf16, original layout)
        pl.BlockSpec((bt, Lk, Dv), lambda b: (b, 0, 0)),   # value  (bf16)
    ]
    out_spec = pl.BlockSpec((bt, Lq, Dv), lambda b: (b, 0, 0))
    out_shape = jax.ShapeDtypeStruct((B, Lq, Dv), jnp.float32)
    cparams = pltpu.CompilerParams(
        dimension_semantics=("parallel",),
        vmem_limit_bytes=int(min(vmem_cap * 3 // 4, 96 << 20)),
    )

    if dropout_p == 0.0:
        # Static no-dropout variant: no mask input, no mask multiply.
        kernel = functools.partial(_kernel_nodrop, fold_scale=fold_scale,
                                   approx_recip=approx_recip)
        return pl.pallas_call(
            kernel, out_shape=out_shape, grid=(B // bt,),
            in_specs=[smem_spec] + common_specs,
            out_specs=out_spec, compiler_params=cparams,
        )(scale, q_bf, k_bf, v_bf)

    keep_prob = 1.0 - float(dropout_p)

    if on_tpu:
        # In-kernel PRNG dropout: only a scalar seed crosses HBM.
        seed_arr = jnp.asarray([seed], dtype=jnp.int32)
        kernel = functools.partial(_kernel_drop_prng, keep_prob=keep_prob,
                                   fold_scale=fold_scale, approx_recip=approx_recip)
        return pl.pallas_call(
            kernel, out_shape=out_shape, grid=(B // bt,),
            in_specs=[smem_spec, smem_spec] + common_specs,
            out_specs=out_spec, compiler_params=cparams,
        )(seed_arr, scale, q_bf, k_bf, v_bf)

    # Fallback (interpret / non-TPU): pre-generated compact bf16 keep mask.
    assert rng is not None, "rng key required for the non-TPU dropout fallback"
    keep = jax.random.bernoulli(rng, p=keep_prob, shape=(B, Lq, Lk)).astype(jnp.bfloat16)
    kernel = functools.partial(_kernel_drop_mask, keep_prob=keep_prob,
                               fold_scale=fold_scale, approx_recip=approx_recip)
    return pl.pallas_call(
        kernel, out_shape=out_shape, grid=(B // bt,),
        in_specs=[smem_spec] + common_specs
                 + [pl.BlockSpec((bt, Lq, Lk), lambda b: (b, 0, 0))],
        out_specs=out_spec, compiler_params=cparams,
    )(scale, q_bf, k_bf, v_bf, keep)


def _reference_no_dropout(query, key, value, scale_factor):
    # Mirrors the kernel's bf16-operand / f32-accumulate matmul path.
    q = query.astype(jnp.bfloat16)
    k = key.astype(jnp.bfloat16)
    v = value.astype(jnp.bfloat16)
    s = jnp.einsum("bqd,bkd->bqk", q, k, preferred_element_type=jnp.float32)
    s = s * jnp.asarray(scale_factor, jnp.float32).reshape(())
    p = jax.nn.softmax(s, axis=-1)
    return jnp.einsum("bqk,bkv->bqv", p.astype(jnp.bfloat16), v,
                      preferred_element_type=jnp.float32)


if __name__ == "__main__":
    # Small, module-consistent shapes: batch=1, Lq=Lk=64, head dim=128, value dim=256
    B, Lq, Lk, D, Dv = 1, 64, 64, 128, 256

    root = jax.random.PRNGKey(0)
    kq, kk, kv, kdrop = jax.random.split(root, 4)
    query = jax.random.normal(kq, (B, Lq, D), dtype=jnp.float32)
    key = jax.random.normal(kk, (B, Lk, D), dtype=jnp.float32)
    value = jax.random.normal(kv, (B, Lk, Dv), dtype=jnp.float32)

    # nn.Parameter(torch.ones(1, 1)) — deterministic init
    scale_factor = jnp.ones((1, 1), dtype=jnp.float32)

    # Correctness check of the deterministic path (dropout disabled).
    out_nodrop = sdpa_pallas(query, key, value, scale_factor, dropout_p=0.0)
    ref = _reference_no_dropout(query, key, value, scale_factor)
    assert out_nodrop.shape == (B, Lq, Dv)
    assert jnp.allclose(out_nodrop, ref, atol=2e-2, rtol=2e-2), "mismatch vs reference"

    # Full forward with dropout_p=0.5 (module default, training semantics).
    out = sdpa_pallas(query, key, value, scale_factor, dropout_p=0.5, seed=0, rng=kdrop)
    jax.block_until_ready(out)
    assert out.shape == (B, Lq, Dv)
    assert bool(jnp.all(jnp.isfinite(out)))
    print("KERNEL_OK")
</pallas_src>

<mosaic_0001>
module attributes {stable_mosaic.version = 11 : i64} {
  func.func @_kernel_nodrop(%arg0: i32, %arg1: memref<1x1xf32, #tpu.memory_space<smem>>, %arg2: memref<1x64x128xbf16, #tpu.memory_space<vmem>>, %arg3: memref<1x64x128xbf16, #tpu.memory_space<vmem>>, %arg4: memref<1x64x256xbf16, #tpu.memory_space<vmem>>, %arg5: memref<1x64x256xf32, #tpu.memory_space<vmem>>) attributes {dimension_semantics = [#tpu.dimension_semantics<parallel>], iteration_bounds = array<i64: 1>, scalar_prefetch = 0 : i64, scratch_operands = 0 : i64, tpu.core_type = #tpu.core_type<tc>, window_params = [{transform_indices = @transform_0, window_bounds = array<i64: 1, 1>}, {transform_indices = @transform_1, window_bounds = array<i64: 1, 64, 128>}, {transform_indices = @transform_2, window_bounds = array<i64: 1, 64, 128>}, {transform_indices = @transform_3, window_bounds = array<i64: 1, 64, 256>}, {transform_indices = @transform_4, window_bounds = array<i64: 1, 64, 256>}]} {
    %c0 = arith.constant 0 : index
    %c0_0 = arith.constant 0 : index
    %0 = memref.load %arg1[%c0, %c0_0] : memref<1x1xf32, #tpu.memory_space<smem>>
    %c0_1 = arith.constant 0 : index
    %c0_2 = arith.constant 0 : index
    %c0_3 = arith.constant 0 : index
    %1 = vector.load %arg2[%c0_1, %c0_2, %c0_3] : memref<1x64x128xbf16, #tpu.memory_space<vmem>>, vector<1x64x128xbf16>
    %c0_4 = arith.constant 0 : index
    %c0_5 = arith.constant 0 : index
    %c0_6 = arith.constant 0 : index
    %2 = vector.load %arg3[%c0_4, %c0_5, %c0_6] : memref<1x64x128xbf16, #tpu.memory_space<vmem>>, vector<1x64x128xbf16>
    "tpu.trace_start"() <{level = 10 : i32, message = "bqd,bkd->bqk"}> : () -> ()
    %cst = arith.constant dense<0.000000e+00> : vector<1x64x64xf32>
    %3 = tpu.matmul %1, %2, %cst {dimension_numbers = #tpu.dot_dimension_numbers<[2], [2], [1], [1], [0, 0, 0, 1, 1, 1], [0], [0]>} : vector<1x64x128xbf16>, vector<1x64x128xbf16>, vector<1x64x64xf32> -> vector<1x64x64xf32>
    "tpu.trace_stop"() : () -> ()
    %4 = vector.broadcast %0 : f32 to vector<1x64x64xf32>
    %5 = arith.mulf %3, %4 : vector<1x64x64xf32>
    %cst_7 = arith.constant dense<0xFF800000> : vector<1x64xf32>
    %6 = vector.multi_reduction <maximumf>, %5, %cst_7 [2] : vector<1x64x64xf32> to vector<1x64xf32>
    %7 = vector.shape_cast %6 : vector<1x64xf32> to vector<1x64x1xf32>
    %8 = vector.broadcast %7 : vector<1x64x1xf32> to vector<1x64x64xf32>
    %9 = arith.subf %5, %8 : vector<1x64x64xf32>
    %10 = math.exp %9 : vector<1x64x64xf32>
    %cst_8 = arith.constant dense<0.000000e+00> : vector<1x64xf32>
    %11 = vector.multi_reduction <add>, %10, %cst_8 [2] : vector<1x64x64xf32> to vector<1x64xf32>
    %12 = vector.shape_cast %11 : vector<1x64xf32> to vector<1x64x1xf32>
    %13 = vector.broadcast %12 : vector<1x64x1xf32> to vector<1x64x64xf32>
    %14 = arith.divf %10, %13 : vector<1x64x64xf32>
    %15 = arith.truncf %14 : vector<1x64x64xf32> to vector<1x64x64xbf16>
    %c0_9 = arith.constant 0 : index
    %c0_10 = arith.constant 0 : index
    %c0_11 = arith.constant 0 : index
    %16 = vector.load %arg4[%c0_9, %c0_10, %c0_11] : memref<1x64x256xbf16, #tpu.memory_space<vmem>>, vector<1x64x256xbf16>
    "tpu.trace_start"() <{level = 10 : i32, message = "bqk,bkv->bqv"}> : () -> ()
    %cst_12 = arith.constant dense<0.000000e+00> : vector<1x64x256xf32>
    %17 = tpu.matmul %15, %16, %cst_12 {dimension_numbers = #tpu.dot_dimension_numbers<[2], [1], [1], [2], [0, 0, 0, 1, 1, 2], [0], [0]>} : vector<1x64x64xbf16>, vector<1x64x256xbf16>, vector<1x64x256xf32> -> vector<1x64x256xf32>
    "tpu.trace_stop"() : () -> ()
    %c0_13 = arith.constant 0 : index
    %c0_14 = arith.constant 0 : index
    %c0_15 = arith.constant 0 : index
    %18 = vector.load %arg5[%c0_13, %c0_14, %c0_15] : memref<1x64x256xf32, #tpu.memory_space<vmem>>, vector<1x64x256xf32>
    tpu.vector_store %arg5[%c0_13, %c0_14, %c0_15], %17 {strides = array<i32>} : memref<1x64x256xf32, #tpu.memory_space<vmem>>, vector<1x64x256xf32>,
    return
  }
  func.func @transform_0(%arg0: i32) -> (i32, i32) {
    %c0_i32 = arith.constant 0 : i32
    %c0_i32_0 = arith.constant 0 : i32
    %c0_i32_1 = arith.constant 0 : i32
    return %c0_i32, %c0_i32_0 : i32, i32
  }
  func.func @transform_1(%arg0: i32) -> (i32, i32, i32) {
    %c0_i32 = arith.constant 0 : i32
    %c0_i32_0 = arith.constant 0 : i32
    %c0_i32_1 = arith.constant 0 : i32
    return %arg0, %c0_i32, %c0_i32_0 : i32, i32, i32
  }
  func.func @transform_2(%arg0: i32) -> (i32, i32, i32) {
    %c0_i32 = arith.constant 0 : i32
    %c0_i32_0 = arith.constant 0 : i32
    %c0_i32_1 = arith.constant 0 : i32
    return %arg0, %c0_i32, %c0_i32_0 : i32, i32, i32
  }
  func.func @transform_3(%arg0: i32) -> (i32, i32, i32) {
    %c0_i32 = arith.constant 0 : i32
    %c0_i32_0 = arith.constant 0 : i32
    %c0_i32_1 = arith.constant 0 : i32
    return %arg0, %c0_i32, %c0_i32_0 : i32, i32, i32
  }
  func.func @transform_4(%arg0: i32) -> (i32, i32, i32) {
    %c0_i32 = arith.constant 0 : i32
    %c0_i32_0 = arith.constant 0 : i32
    %c0_i32_1 = arith.constant 0 : i32
    return %arg0, %c0_i32, %c0_i32_0 : i32, i32, i32
  }
}

</mosaic_0001>

<llo_original>
// kernel: tpu_custom_call.1
$region0: #{tpu_custom_call.1}
  #allocation0 [shape = 'u32[]', space=smem, size = 0x4, offset = 0x4, fixed_abs, tag = 'smem constant byte address 0x4 - core index']
  #allocation1 [shape = 'u32[144,128]{1,0:T(1,128)}', space=vmem, size = 0x12000, scoped, tag = 'internal scratch']
  #allocation2 [shape = 'f32[1,1]{1,0:T(1,128)S(6)}', space=smem, size = 0x200, scoped, tag = 'scoped memory for tpu_custom_call.1']
  %s0 = inlined_call_operand.<no memory space> [shape: f32[1,1], index: 0, kind: input, shape index: {}]
  %s1 = inlined_call_operand.hbm [shape: bf16[1,64,128], index: 1, kind: input, shape index: {}]
  %s2 = inlined_call_operand.hbm [shape: bf16[1,64,128], index: 2, kind: input, shape index: {}]
  %s3 = inlined_call_operand.hbm [shape: bf16[1,64,256], index: 3, kind: input, shape index: {}]
  %s4 = inlined_call_operand.hbm [shape: f32[1,64,256], index: 4, kind: output, shape index: {}]
  %s5 = sld [smem:[#allocation0]]
  $region38: #{tpu_custom_call.1} parent=0
    _
  %s7 = ssub.s32 1, %s5
  %s8 = scalar_select 0, %s7, %s5
  %9 = sst [smem:[#allocation2]] %s0
  $region1: #{tpu_custom_call.1} parent=0
    #allocation3 [shape = 'u8[16384]{0}', space=vmem, size = 0x4000, scoped, tag = 'input window, operand 1, single buffered']
    #allocation4 [shape = 's32[1]{0}', space=sflag, size = 0x4, scoped, tag = 'scoped memory for tpu_custom_call.1']
    #allocation5 [shape = 's32[1]{0}', space=sflag, size = 0x4, scoped, tag = 'scoped memory for tpu_custom_call.1']
    #allocation6 [shape = 'u8[16384]{0}', space=vmem, size = 0x4000, scoped, tag = 'input window, operand 2, single buffered']
    #allocation7 [shape = 's32[1]{0}', space=sflag, size = 0x4, scoped, tag = 'scoped memory for tpu_custom_call.1']
    #allocation8 [shape = 'u8[32768]{0}', space=vmem, size = 0x8000, scoped, tag = 'input window, operand 3, single buffered']
    #allocation9 [shape = 'u8[65536]{0}', space=vmem, size = 0x10000, scoped, tag = 'output window, operand 0, single buffered']
    %10 = vsyncpa [#allocation4], 0
    %11 = vsyncpa [#allocation7], 0
    %12 = vsyncpa [#allocation5], 0
    // Predicated region
    $region2: #{tpu_custom_call.1} parent=1 // pred_check
      _
    $region3: #{tpu_custom_call.1} parent=1 // pred_check_branch
      %14 = sbr.rel (0) target = $region5
    $region4: #{tpu_custom_call.1} parent=1 // pred_region
      _
    $region5: #{tpu_custom_call.1} parent=1 // pred_fallthru
      _
    // Predicated region
    $region6: #{tpu_custom_call.1} parent=1 // pred_check
      _
    $region7: #{tpu_custom_call.1} parent=1 // pred_check_branch
      %16 = sbr.rel (0) target = $region9
    $region8: #{tpu_custom_call.1} parent=1 // pred_region
      %s18 = ssub.s32 512, 512
      %19 = vsyncadd [#allocation4], %s18
      %s20 = sshll.u32 [#allocation3], 4
      %s21 = int_to_ptr.vmem [resolvable:$true] %s20
      %26 = dma.hbm_to_vmem [thread:$0]  %s1, 512, %s21, [#allocation4], 64, 64, 4
    $region9: #{tpu_custom_call.1} parent=1 // pred_fallthru
      _
    // Predicated region
    $region10: #{tpu_custom_call.1} parent=1 // pred_check
      _
    $region11: #{tpu_custom_call.1} parent=1 // pred_check_branch
      %28 = sbr.rel (0) target = $region13
    $region12: #{tpu_custom_call.1} parent=1 // pred_region
      %s30 = ssub.s32 512, 512
      %31 = vsyncadd [#allocation7], %s30
      %s32 = sshll.u32 [#allocation6], 4
      %s33 = int_to_ptr.vmem [resolvable:$true] %s32
      %38 = dma.hbm_to_vmem [thread:$0]  %s2, 512, %s33, [#allocation7], 64, 64, 4
    $region13: #{tpu_custom_call.1} parent=1 // pred_fallthru
      _
    // Predicated region
    $region14: #{tpu_custom_call.1} parent=1 // pred_check
      _
    $region15: #{tpu_custom_call.1} parent=1 // pred_check_branch
      %40 = sbr.rel (0) target = $region17
    $region16: #{tpu_custom_call.1} parent=1 // pred_region
      %s42 = ssub.s32 1024, 1024
      %43 = vsyncadd [#allocation7], %s42
      %s44 = sshll.u32 [#allocation8], 4
      %s45 = int_to_ptr.vmem [resolvable:$true] %s44
      %50 = dma.hbm_to_vmem [thread:$0]  %s3, 1024, %s45, [#allocation7], 128, 128, 8
    $region17: #{tpu_custom_call.1} parent=1 // pred_fallthru
      _
    // Predicated region
    $region18: #{tpu_custom_call.1} parent=1 // pred_check
      _
    $region19: #{tpu_custom_call.1} parent=1 // pred_check_branch
      %52 = sbr.rel (0) target = $region21
    $region20: #{tpu_custom_call.1} parent=1 // pred_region
      %53 = dma.done [#allocation4], 512
    $region21: #{tpu_custom_call.1} parent=1 // pred_fallthru
      _
    // Predicated region
    $region22: #{tpu_custom_call.1} parent=1 // pred_check
      _
    $region23: #{tpu_custom_call.1} parent=1 // pred_check_branch
      %55 = sbr.rel (0) target = $region25
    $region24: #{tpu_custom_call.1} parent=1 // pred_region
      %56 = dma.done [#allocation7], 512
    $region25: #{tpu_custom_call.1} parent=1 // pred_fallthru
      _
    // Predicated region
    $region26: #{tpu_custom_call.1} parent=1 // pred_check
      _
    $region27: #{tpu_custom_call.1} parent=1 // pred_check_branch
      %58 = sbr.rel (0) target = $region29
    $region28: #{tpu_custom_call.1} parent=1 // pred_region
      %59 = dma.done [#allocation7], 1024
    $region29: #{tpu_custom_call.1} parent=1 // pred_fallthru
      _
    %s61 = sld [smem:[#allocation2]]
    %v62 = vld [vmem:[#allocation3] sm:$0xf]
    %v63 = vld [vmem:[#allocation3 + $0x4] sm:$0xf]
    %v64 = vld [vmem:[#allocation3 + $0x8] sm:$0xf]
    %v65 = vld [vmem:[#allocation3 + $0xc] sm:$0xf]
    %v66 = vld [vmem:[#allocation3 + $0x10] sm:$0xf]
    %v67 = vld [vmem:[#allocation3 + $0x14] sm:$0xf]
    %v68 = vld [vmem:[#allocation3 + $0x18] sm:$0xf]
    %v69 = vld [vmem:[#allocation3 + $0x1c] sm:$0xf]
    %v70 = vld [vmem:[#allocation6] sm:$0xf]
    %v71 = vld [vmem:[#allocation6 + $0x4] sm:$0xf]
    %v72 = vld [vmem:[#allocation6 + $0x8] sm:$0xf]
    %v73 = vld [vmem:[#allocation6 + $0xc] sm:$0xf]
    %v74 = vld [vmem:[#allocation6 + $0x10] sm:$0xf]
    %v75 = vld [vmem:[#allocation6 + $0x14] sm:$0xf]
    %v76 = vld [vmem:[#allocation6 + $0x18] sm:$0xf]
    %v77 = vld [vmem:[#allocation6 + $0x1c] sm:$0xf]
    %v86 = vunpack.c.l.b16 %v62
    %v87 = vunpack.c.l.b16 %v63
    %v88 = vunpack.c.l.b16 %v64
    %v89 = vunpack.c.l.b16 %v65
    %v90 = vunpack.c.l.b16 %v66
    %v91 = vunpack.c.l.b16 %v67
    %v92 = vunpack.c.l.b16 %v68
    %v93 = vunpack.c.l.b16 %v69
    %v94 = vpack.c.b16 %v87, %v86
    %v95 = vpack.c.b16 %v89, %v88
    %v96 = vpack.c.b16 %v91, %v90
    %v97 = vpack.c.b16 %v93, %v92
    %v110 = vunpack.c.l.b16 %v70
    %v111 = vunpack.c.l.b16 %v71
    %v112 = vunpack.c.l.b16 %v72
    %v113 = vunpack.c.l.b16 %v73
    %v114 = vunpack.c.l.b16 %v74
    %v115 = vunpack.c.l.b16 %v75
    %v116 = vunpack.c.l.b16 %v76
    %v117 = vunpack.c.l.b16 %v77
    %v118 = vpack.c.b16 %v111, %v110
    %v119 = vpack.c.b16 %v113, %v112
    %v120 = vpack.c.b16 %v115, %v114
    %v121 = vpack.c.b16 %v117, %v116
    %126 = vmatprep.subr.bf16.mxu0 0
    %127 = vmatpush1.bf16.xpose.msra.mxu0 %v118
    %128 = vmatprep.subr.bf16.mxu0 0
    %129 = vmatpush1.bf16.xpose.msra.mxu0 %v119
    %130 = vmatprep.subr.bf16.mxu0 0
    %131 = vmatpush1.bf16.xpose.msra.mxu0 %v120
    %132 = vmatprep.subr.bf16.mxu0 0
    %133 = vmatpush1.bf16.xpose.msra.mxu0 %v121
    %134 = vmatprep.subr.bf16.mxu0 0
    %135 = vmatpush1.bf16.xpose.msra.mxu0 0
    %136 = vmatprep.subr.bf16.mxu0 0
    %137 = vmatpush1.bf16.xpose.msra.mxu0 0
    %138 = vmatprep.subr.bf16.mxu0 0
    %139 = vmatpush1.bf16.xpose.msra.mxu0 0
    %140 = vmatprep.subr.bf16.mxu0 0
    %141 = vmatpush1.bf16.xpose.msra.mxu0 0
    %142 = vmatprep.subr.bf16.mxu0 0
    %143 = vmatpush1.bf16.xpose.msra.mxu0 0
    %144 = vmatprep.subr.bf16.mxu0 0
    %145 = vmatpush1.bf16.xpose.msra.mxu0 0
    %146 = vmatprep.subr.bf16.mxu0 0
    %147 = vmatpush1.bf16.xpose.msra.mxu0 0
    %148 = vmatprep.subr.bf16.mxu0 0
    %149 = vmatpush1.bf16.xpose.msra.mxu0 0
    %150 = vmatprep.subr.bf16.mxu0 0
    %151 = vmatpush1.bf16.xpose.msra.mxu0 0
    %152 = vmatprep.subr.bf16.mxu0 0
    %153 = vmatpush1.bf16.xpose.msra.mxu0 0
    %154 = vmatprep.subr.bf16.mxu0 0
    %155 = vmatpush1.bf16.xpose.msra.mxu0 0
    %156 = vmatprep.subr.bf16.mxu0 0
    %157 = vmatpush1.bf16.xpose.msra.mxu0 0
    %158 = vmatprep.mubr.bf16.mxu0 0
    %159 = vmatmul.mubr.bf16.gmra.mrb[0].mxu0 %v94
    %v160 = vpop.f32.mrb[0].mxu0
    %v161 = vadd.f32 0.0, %v160
    %v162 = vpop.f32.mrb[0].mxu0
    %v163 = vpop.f32.mrb[0].mxu0
    %v164 = vadd.f32 0.0, %v163
    %v165 = vpop.f32.mrb[0].mxu0
    %166 = vmatprep.mubr.bf16.mxu0 0
    %167 = vmatmul.mubr.bf16.gmra.mrb[0].mxu0 %v95
    %v168 = vpop.f32.mrb[0].mxu0
    %v169 = vadd.f32 0.0, %v168
    %v170 = vpop.f32.mrb[0].mxu0
    %v171 = vpop.f32.mrb[0].mxu0
    %v172 = vadd.f32 0.0, %v171
    %v173 = vpop.f32.mrb[0].mxu0
    %174 = vmatprep.mubr.bf16.mxu0 0
    %175 = vmatmul.mubr.bf16.gmra.mrb[0].mxu0 %v96
    %v176 = vpop.f32.mrb[0].mxu0
    %v177 = vadd.f32 0.0, %v176
    %v178 = vpop.f32.mrb[0].mxu0
    %v179 = vpop.f32.mrb[0].mxu0
    %v180 = vadd.f32 0.0, %v179
    %v181 = vpop.f32.mrb[0].mxu0
    %182 = vmatprep.mubr.bf16.mxu0 0
    %183 = vmatmul.mubr.bf16.gmra.mrb[0].mxu0 %v97
    %v184 = vpop.f32.mrb[0].mxu0
    %v185 = vadd.f32 0.0, %v184
    %v186 = vpop.f32.mrb[0].mxu0
    %v187 = vpop.f32.mrb[0].mxu0
    %v188 = vadd.f32 0.0, %v187
    %v189 = vpop.f32.mrb[0].mxu0
    %190 = vdwg.mxu0
    %v191 = vstv %s61
    %v192 = vmul.f32 %v161, %v191
    %v193 = vmul.f32 %v164, %v191
    %v194 = vmul.f32 %v169, %v191
    %v195 = vmul.f32 %v172, %v191
    %v196 = vmul.f32 %v177, %v191
    %v197 = vmul.f32 %v180, %v191
    %v198 = vmul.f32 %v185, %v191
    %v199 = vmul.f32 %v188, %v191
    %vm200 = vcmask 523264
    %v201 = vsel %vm200, %v192, -inf
    %202 = vmax.xlane.f32.xlu0 %v201
    %v203 = vpop.xlane.xlu0 %202
    %v204 = vsel %vm200, %v193, -inf
    %205 = vmax.xlane.f32.xlu0 %v204
    %v206 = vpop.xlane.xlu0 %205
    %v207 = vsel %vm200, %v194, -inf
    %208 = vmax.xlane.f32.xlu0 %v207
    %v209 = vpop.xlane.xlu0 %208
    %v210 = vsel %vm200, %v195, -inf
    %211 = vmax.xlane.f32.xlu0 %v210
    %v212 = vpop.xlane.xlu0 %211
    %v213 = vsel %vm200, %v196, -inf
    %214 = vmax.xlane.f32.xlu0 %v213
    %v215 = vpop.xlane.xlu0 %214
    %v216 = vsel %vm200, %v197, -inf
    %217 = vmax.xlane.f32.xlu0 %v216
    %v218 = vpop.xlane.xlu0 %217
    %v219 = vsel %vm200, %v198, -inf
    %220 = vmax.xlane.f32.xlu0 %v219
    %v221 = vpop.xlane.xlu0 %220
    %v222 = vsel %vm200, %v199, -inf
    %223 = vmax.xlane.f32.xlu0 %v222
    %v224 = vpop.xlane.xlu0 %223
    %v225 = vsub.f32 %v192, %v203
    %v226 = vsub.f32 %v193, %v206
    %v227 = vsub.f32 %v194, %v209
    %v228 = vsub.f32 %v195, %v212
    %v229 = vsub.f32 %v196, %v215
    %v230 = vsub.f32 %v197, %v218
    %v231 = vsub.f32 %v198, %v221
    %v232 = vsub.f32 %v199, %v224
    %v233 = vmul.f32 %v225, 1.442695
    %v234 = vpow.pop %v233
    %v235 = vmul.f32 %v226, 1.442695
    %v236 = vpow.pop %v235
    %v237 = vmul.f32 %v227, 1.442695
    %v238 = vpow.pop %v237
    %v239 = vmul.f32 %v228, 1.442695
    %v240 = vpow.pop %v239
    %v241 = vmul.f32 %v229, 1.442695
    %v242 = vpow.pop %v241
    %v243 = vmul.f32 %v230, 1.442695
    %v244 = vpow.pop %v243
    %v245 = vmul.f32 %v231, 1.442695
    %v246 = vpow.pop %v245
    %v247 = vmul.f32 %v232, 1.442695
    %v248 = vpow.pop %v247
    %v249 = vsel %vm200, %v234, 0.0
    %250 = vadd.xlane.f32.xlu0 %v249
    %v251 = vpop.xlane.xlu0 %250
    %v252 = vsel %vm200, %v236, 0.0
    %253 = vadd.xlane.f32.xlu0 %v252
    %v254 = vpop.xlane.xlu0 %253
    %v255 = vsel %vm200, %v238, 0.0
    %256 = vadd.xlane.f32.xlu0 %v255
    %v257 = vpop.xlane.xlu0 %256
    %v258 = vsel %vm200, %v240, 0.0
    %259 = vadd.xlane.f32.xlu0 %v258
    %v260 = vpop.xlane.xlu0 %259
    %v261 = vsel %vm200, %v242, 0.0
    %262 = vadd.xlane.f32.xlu0 %v261
    %v263 = vpop.xlane.xlu0 %262
    %v264 = vsel %vm200, %v244, 0.0
    %265 = vadd.xlane.f32.xlu0 %v264
    %v266 = vpop.xlane.xlu0 %265
    %v267 = vsel %vm200, %v246, 0.0
    %268 = vadd.xlane.f32.xlu0 %v267
    %v269 = vpop.xlane.xlu0 %268
    %v270 = vsel %vm200, %v248, 0.0
    %271 = vadd.xlane.f32.xlu0 %v270
    %v272 = vpop.xlane.xlu0 %271
    %v273 = vrcp.pop %v251
    %v274 = vmul.f32 %v234, %v273
    %v275 = vrcp.pop %v254
    %v276 = vmul.f32 %v236, %v275
    %v277 = vrcp.pop %v257
    %v278 = vmul.f32 %v238, %v277
    %v279 = vrcp.pop %v260
    %v280 = vmul.f32 %v240, %v279
    %v281 = vrcp.pop %v263
    %v282 = vmul.f32 %v242, %v281
    %v283 = vrcp.pop %v266
    %v284 = vmul.f32 %v244, %v283
    %v285 = vrcp.pop %v269
    %v286 = vmul.f32 %v246, %v285
    %v287 = vrcp.pop %v272
    %v288 = vmul.f32 %v248, %v287
    %v289 = vpack.c.bf16 %v276, %v274
    %v290 = vpack.c.bf16 %v280, %v278
    %v291 = vpack.c.bf16 %v284, %v282
    %v292 = vpack.c.bf16 %v288, %v286
    %v293 = vld [vmem:[#allocation8] sm:$0xff]
    %v294 = vld [vmem:[#allocation8 + $0x8] sm:$0xff]
    %v295 = vld [vmem:[#allocation8 + $0x10] sm:$0xff]
    %v296 = vld [vmem:[#allocation8 + $0x18] sm:$0xff]
    %v297 = vld [vmem:[#allocation8 + $0x20] sm:$0xff]
    %v298 = vld [vmem:[#allocation8 + $0x28] sm:$0xff]
    %v299 = vld [vmem:[#allocation8 + $0x30] sm:$0xff]
    %v300 = vld [vmem:[#allocation8 + $0x38] sm:$0xff]
    %v309 = vunpack.c.l.b16 %v293
    %v310 = vunpack.c.h.b16 %v293
    %v311 = vunpack.c.l.b16 %v294
    %v312 = vunpack.c.h.b16 %v294
    %v313 = vunpack.c.l.b16 %v295
    %v314 = vunpack.c.h.b16 %v295
    %v315 = vunpack.c.l.b16 %v296
    %v316 = vunpack.c.h.b16 %v296
    %v317 = vunpack.c.l.b16 %v297
    %v318 = vunpack.c.h.b16 %v297
    %v319 = vunpack.c.l.b16 %v298
    %v320 = vunpack.c.h.b16 %v298
    %v321 = vunpack.c.l.b16 %v299
    %v322 = vunpack.c.h.b16 %v299
    %v323 = vunpack.c.l.b16 %v300
    %v324 = vunpack.c.h.b16 %v300
    %v325 = vpack.c.b16 %v311, %v309
    %v326 = vpack.c.b16 %v312, %v310
    %v327 = vpack.c.b16 %v315, %v313
    %v328 = vpack.c.b16 %v316, %v314
    %v329 = vpack.c.b16 %v319, %v317
    %v330 = vpack.c.b16 %v320, %v318
    %v331 = vpack.c.b16 %v323, %v321
    %v332 = vpack.c.b16 %v324, %v322
    %v342 = vsel %vm200, %v289, 0
    %v345 = vsel %vm200, %v290, 0
    %v348 = vsel %vm200, %v291, 0
    %v351 = vsel %vm200, %v292, 0
    %353 = vmatprep.subr.bf16.mxu0 %v326
    %354 = vmatpush1.bf16.msra.mxu0 %v325
    %355 = vmatprep.subr.bf16.mxu0 %v328
    %356 = vmatpush1.bf16.msra.mxu0 %v327
    %357 = vmatprep.subr.bf16.mxu0 %v330
    %358 = vmatpush1.bf16.msra.mxu0 %v329
    %359 = vmatprep.subr.bf16.mxu0 %v332
    %360 = vmatpush1.bf16.msra.mxu0 %v331
    %361 = vmatprep.subr.bf16.mxu0 0
    %362 = vmatpush1.bf16.msra.mxu0 0
    %363 = vmatprep.subr.bf16.mxu0 0
    %364 = vmatpush1.bf16.msra.mxu0 0
    %365 = vmatprep.subr.bf16.mxu0 0
    %366 = vmatpush1.bf16.msra.mxu0 0
    %367 = vmatprep.subr.bf16.mxu0 0
    %368 = vmatpush1.bf16.msra.mxu0 0
    %369 = vmatprep.subr.bf16.mxu0 0
    %370 = vmatpush1.bf16.msra.mxu0 0
    %371 = vmatprep.subr.bf16.mxu0 0
    %372 = vmatpush1.bf16.msra.mxu0 0
    %373 = vmatprep.subr.bf16.mxu0 0
    %374 = vmatpush1.bf16.msra.mxu0 0
    %375 = vmatprep.subr.bf16.mxu0 0
    %376 = vmatpush1.bf16.msra.mxu0 0
    %377 = vmatprep.subr.bf16.mxu0 0
    %378 = vmatpush1.bf16.msra.mxu0 0
    %379 = vmatprep.subr.bf16.mxu0 0
    %380 = vmatpush1.bf16.msra.mxu0 0
    %381 = vmatprep.subr.bf16.mxu0 0
    %382 = vmatpush1.bf16.msra.mxu0 0
    %383 = vmatprep.subr.bf16.mxu0 0
    %384 = vmatpush1.bf16.msra.mxu0 0
    %385 = vmatprep.mubr.bf16.mxu0 0
    %386 = vmatmul.mubr.bf16.gmra.mrb[0].mxu0 %v342
    %v387 = vpop.f32.mrb[0].mxu0
    %v388 = vadd.f32 0.0, %v387
    %v389 = vpop.f32.mrb[0].mxu0
    %v390 = vadd.f32 0.0, %v389
    %v391 = vpop.f32.mrb[0].mxu0
    %v392 = vadd.f32 0.0, %v391
    %v393 = vpop.f32.mrb[0].mxu0
    %v394 = vadd.f32 0.0, %v393
    %395 = vmatprep.mubr.bf16.mxu0 0
    %396 = vmatmul.mubr.bf16.gmra.mrb[0].mxu0 %v345
    %v397 = vpop.f32.mrb[0].mxu0
    %v398 = vadd.f32 0.0, %v397
    %v399 = vpop.f32.mrb[0].mxu0
    %v400 = vadd.f32 0.0, %v399
    %v401 = vpop.f32.mrb[0].mxu0
    %v402 = vadd.f32 0.0, %v401
    %v403 = vpop.f32.mrb[0].mxu0
    %v404 = vadd.f32 0.0, %v403
    %405 = vmatprep.mubr.bf16.mxu0 0
    %406 = vmatmul.mubr.bf16.gmra.mrb[0].mxu0 %v348
    %v407 = vpop.f32.mrb[0].mxu0
    %v408 = vadd.f32 0.0, %v407
    %v409 = vpop.f32.mrb[0].mxu0
    %v410 = vadd.f32 0.0, %v409
    %v411 = vpop.f32.mrb[0].mxu0
    %v412 = vadd.f32 0.0, %v411
    %v413 = vpop.f32.mrb[0].mxu0
    %v414 = vadd.f32 0.0, %v413
    %415 = vmatprep.mubr.bf16.mxu0 0
    %416 = vmatmul.mubr.bf16.gmra.mrb[0].mxu0 %v351
    %v417 = vpop.f32.mrb[0].mxu0
    %v418 = vadd.f32 0.0, %v417
    %v419 = vpop.f32.mrb[0].mxu0
    %v420 = vadd.f32 0.0, %v419
    %v421 = vpop.f32.mrb[0].mxu0
    %v422 = vadd.f32 0.0, %v421
    %v423 = vpop.f32.mrb[0].mxu0
    %v424 = vadd.f32 0.0, %v423
    %425 = vdwg.mxu0
    %426 = vst [vmem:[#allocation9] sm:$0xff] %v388
    %427 = vst [vmem:[#allocation9 + $0x8] sm:$0xff] %v390
    %428 = vst [vmem:[#allocation9 + $0x10] sm:$0xff] %v392
    %429 = vst [vmem:[#allocation9 + $0x18] sm:$0xff] %v394
    %430 = vst [vmem:[#allocation9 + $0x20] sm:$0xff] %v398
    %431 = vst [vmem:[#allocation9 + $0x28] sm:$0xff] %v400
    %432 = vst [vmem:[#allocation9 + $0x30] sm:$0xff] %v402
    %433 = vst [vmem:[#allocation9 + $0x38] sm:$0xff] %v404
    %434 = vst [vmem:[#allocation9 + $0x40] sm:$0xff] %v408
    %435 = vst [vmem:[#allocation9 + $0x48] sm:$0xff] %v410
    %436 = vst [vmem:[#allocation9 + $0x50] sm:$0xff] %v412
    %437 = vst [vmem:[#allocation9 + $0x58] sm:$0xff] %v414
    %438 = vst [vmem:[#allocation9 + $0x60] sm:$0xff] %v418
    %439 = vst [vmem:[#allocation9 + $0x68] sm:$0xff] %v420
    %440 = vst [vmem:[#allocation9 + $0x70] sm:$0xff] %v422
    %441 = vst [vmem:[#allocation9 + $0x78] sm:$0xff] %v424
    // Predicated region
    $region30: #{tpu_custom_call.1} parent=1 // pred_check
      _
    $region31: #{tpu_custom_call.1} parent=1 // pred_check_branch
      %443 = sbr.rel (0) target = $region33
    $region32: #{tpu_custom_call.1} parent=1 // pred_region
      %s445 = ssub.s32 2048, 2048
      %446 = vsyncadd [#allocation5], %s445
      %s447 = sshll.u32 [#allocation9], 4
      %s448 = int_to_ptr.vmem [resolvable:$true] %s447
      %453 = dma.vmem_to_hbm [thread:$0]  %s448, 2048, %s4, [#allocation5], 256, 256, 16
    $region33: #{tpu_custom_call.1} parent=1 // pred_fallthru
      _
    // Predicated region
    $region34: #{tpu_custom_call.1} parent=1 // pred_check
      _
    $region35: #{tpu_custom_call.1} parent=1 // pred_check_branch
      %455 = sbr.rel (0) target = $region37
    $region36: #{tpu_custom_call.1} parent=1 // pred_region
      %456 = dma.done [#allocation5], 2048
    $region37: #{tpu_custom_call.1} parent=1 // pred_fallthru
      _
    %457 = vsyncpa [#allocation4], 1
    %458 = vsyncpa [#allocation7], 1
    %459 = vsyncpa [#allocation5], 1

</llo_original>
